<compile_context>
chip_gen: v7x
topology: tpu7x:2x2x1
jax: 0.10.0
libtpu: 0.0.40
codegen_flags: <defaults>
</compile_context>

<pallas_src>
import jax
import jax.numpy as jnp
from jax import lax
from jax.experimental import pallas as pl
from jax.experimental.pallas import tpu as pltpu

K = 3          # kernel_size
PAD = K - 1    # causal padding (top / left only)


def _build_col(src, W, col_masks):
    """im2col for a causal 3x3 conv on ONE image's lane-flattened activations.

    src: (Cp, P) f32 with P = H*W (row-major flatten, p = h*W + w).
    col_masks: {1: w_idx >= 1, 2: w_idx >= 2} hoisted boolean (Cp, P) masks.
    Returns (K*K*Cp, P) f32 where row (kh*K+kw)*Cp + c at column p holds
    image[c, h+kh-PAD, w+kw-PAD] (0 when out of range, i.e. causal zero pad).
    """
    C, P = src.shape
    slabs = []
    for kh in range(K):
        for kw in range(K):
            dh, dw = kh - PAD, kw - PAD          # in {-2, -1, 0}
            shift = -(dh * W + dw)               # >= 0 lane shift to the right
            if shift == 0:
                s = src
            else:
                # Shift right by `shift`, zero-filling on the left. Rows with
                # h+dh < 0 land entirely in the zero-filled region (per-image
                # causality for free), so only the column condition is masked.
                s = jnp.concatenate(
                    [jnp.zeros((C, shift), src.dtype), src[:, :P - shift]], axis=1)
            if dw < 0:
                s = jnp.where(col_masks[-dw], s, 0.0)   # hoisted causal column mask
            slabs.append(s)
    # Cp is a multiple of 8, so every sublane concatenation is (8,128)-tile aligned.
    return jnp.concatenate(slabs, axis=0)        # (K*K*Cp, P) f32


def _make_kernel(H, W, C, Cp, B_blk):
    P = H * W

    def basic_block_kernel(x_ref, w_ref, o_ref):
        # x_ref: (B_blk, C, P)        f32   unpadded channels straight from HBM
        # w_ref: (2, Cp, K*K*Cp)      bf16  [conv1, conv2], resident across the grid
        # o_ref: (B_blk, C, P)        f32   unpadded channels (no padded writeback)

        # ---- hoisted geometry constants: built once, reused for both convs and
        # ---- every image in the block (JAX does not CSE broadcast_in_dim). ----
        p_idx = lax.broadcasted_iota(jnp.int32, (Cp, P), 1)
        if (W & (W - 1)) == 0:                       # power-of-two width: cheap bit-and
            w_idx = jnp.bitwise_and(p_idx, W - 1)
        else:
            w_idx = p_idx % W                        # one modulo per invocation only
        col_masks = {1: w_idx >= 1, 2: w_idx >= 2}
        w1 = w_ref[0]                                # (Cp, K*K*Cp) bf16
        w2 = w_ref[1]
        czeros = None if Cp == C else jnp.zeros((Cp - C, P), jnp.float32)

        # Per-image loop, fully unrolled (B_blk is small & static) == unrolled
        # fori_loop with static indices; independent images give the scheduler ILP
        # across the serial conv1 -> conv2 dependency.
        # TODO(synk): for large B_blk, pack images along the lane axis and issue one
        # (Cp, K*K*Cp) @ (K*K*Cp, B_blk*P) matmul per conv (requires h-row masks).
        for b in range(B_blk):
            xv_c = x_ref[b]                                              # (C, P) f32
            xv = xv_c if czeros is None else jnp.concatenate([xv_c, czeros], axis=0)

            # conv1: single bf16 MXU matmul, f32 accumulation
            col1 = _build_col(xv, W, col_masks).astype(jnp.bfloat16)     # (K*K*Cp, P)
            h1 = jnp.dot(w1, col1, preferred_element_type=jnp.float32)   # (Cp, P) f32
            mid = jnp.maximum(h1, 0.0)                                   # ReLU

            # conv2: same, reading the in-register ReLU output (no scratch round-trip)
            col2 = _build_col(mid, W, col_masks).astype(jnp.bfloat16)
            h2 = jnp.dot(w2, col2, preferred_element_type=jnp.float32)

            # residual add (downsample=None -> identity = x, EXACT f32) + final ReLU;
            # store only the real channels (lane-dense, no padded writeback).
            out = jnp.maximum(h2[:C] + xv_c, 0.0)                        # (C, P) f32
            o_ref[b] = out.astype(o_ref.dtype)

    return basic_block_kernel


def _pack_weight(v, g, Cp):
    """Weight norm + repack to the kernel's (Cp, K*K*Cp) bf16 layout.

    v: (Cout, Cin, K, K) PyTorch layout; g: (Cout,).  w = g * v / ||v|| with the norm
    over (Cin, kh, kw) per output channel (PyTorch weight_norm dim=0; no epsilon,
    matching PyTorch semantics -- ||v|| == 0 yields NaN/Inf by design).  Column index
    (kh*K + kw)*Cp + cin matches _build_col's row ordering.
    """
    norm = jnp.sqrt(jnp.sum(v * v, axis=(1, 2, 3), keepdims=True))
    w = v * (g.reshape(-1, 1, 1, 1) / norm)                 # (Cout, Cin, K, K)
    Cout, Cin = w.shape[0], w.shape[1]
    w = jnp.transpose(w, (0, 2, 3, 1))                      # (Cout, K, K, Cin)
    w = jnp.pad(w, ((0, Cp - Cout), (0, 0), (0, 0), (0, Cp - Cin)))
    return w.reshape(Cp, K * K * Cp).astype(jnp.bfloat16)


def _pick_block_batch(N, C, P):
    """Images per grid step: as many as fit a modest VMEM budget, capped, while
    keeping >= 2 grid steps (feed both v7x TensorCores) whenever N allows it."""
    per_img = 2 * 2 * C * P * 4            # double-buffered in + out f32 blocks
    cap = max(1, min(32, (8 * 1024 * 1024) // per_img, N))
    divs = [b for b in range(1, cap + 1) if N % b == 0]
    multi = [b for b in divs if N // b >= 2]
    return max(multi) if multi else max(divs)


def basic_block(x_nchw, v1, g1, v2, g2, block_batch=None):
    # x_nchw: (N, C, H, W) as in PyTorch
    N, C, H, W = x_nchw.shape
    assert v1.shape[0] == C and v2.shape[0] == C, \
        "residual identity add requires out_channels == in_channels (downsample=None)"
    P = H * W
    Cp = max(8, ((C + 7) // 8) * 8)         # in-register channel pad (f32 sublane quantum)

    B_blk = _pick_block_batch(N, C, P) if block_batch is None else block_batch
    assert N % B_blk == 0

    # NCHW -> (N, C, P) is a pure contiguous reshape: no transpose, no pad, no HBM copy.
    x3 = x_nchw.reshape(N, C, P)

    # Both conv weights stacked into one resident bf16 input (single DMA / spec).
    w_all = jnp.stack([_pack_weight(v1, g1, Cp), _pack_weight(v2, g2, Cp)], axis=0)

    out = pl.pallas_call(
        _make_kernel(H, W, C, Cp, B_blk),
        out_shape=jax.ShapeDtypeStruct((N, C, P), x_nchw.dtype),
        grid_spec=pltpu.PrefetchScalarGridSpec(
            num_scalar_prefetch=0,
            grid=(N // B_blk,),
            in_specs=[
                # (C, P) block dims equal the full array dims -> legal; padding to 8
                # sublanes happens in registers, not in HBM.
                pl.BlockSpec((B_blk, C, P), lambda n: (n, 0, 0)),
                pl.BlockSpec((2, Cp, K * K * Cp), lambda n: (0, 0, 0)),
            ],
            out_specs=pl.BlockSpec((B_blk, C, P), lambda n: (n, 0, 0)),
        ),
        compiler_params=pltpu.CompilerParams(
            dimension_semantics=("parallel",),          # grid steps split across TCs
            vmem_limit_bytes=32 * 1024 * 1024,
        ),
    )(x3, w_all)

    # (N, C, P) -> (N, C, H, W): contiguous reshape, no extra HBM copy pass.
    return out.reshape(N, C, H, W)


def ref_basic_block(x, v1, g1, v2, g2):
    """Pure-JAX reference mirroring the kernel numerics (bf16 conv operands,
    f32 accumulation, exact f32 residual add / ReLU)."""
    def wn(v, g):
        norm = jnp.sqrt(jnp.sum(v * v, axis=(1, 2, 3), keepdims=True))
        return v * (g.reshape(-1, 1, 1, 1) / norm)

    def q(a):  # round to bf16 (what the MXU sees), keep f32 container
        return a.astype(jnp.bfloat16).astype(jnp.float32)

    def causal_conv(y, w):
        yp = jnp.pad(y, ((0, 0), (0, 0), (PAD, 0), (PAD, 0)))
        return lax.conv_general_dilated(
            q(yp), q(w), window_strides=(1, 1), padding="VALID",
            dimension_numbers=("NCHW", "OIHW", "NCHW"))

    w1, w2 = wn(v1, g1), wn(v2, g2)
    out = jnp.maximum(causal_conv(x, w1), 0.0)
    out = causal_conv(out, w2)
    return jnp.maximum(out + x, 0.0)


if __name__ == "__main__":
    key = jax.random.PRNGKey(0)
    k1, k2, k3 = jax.random.split(key, 3)

    # BasicBlock(in_channels=4, out_channels=4, stride=1, downsample=None, isfinal=False)
    # N=4 so the batched grid (B_blk=2, grid=2) is actually exercised.
    N, C, H, W = 4, 4, 16, 16
    x = jax.random.normal(k1, (N, C, H, W), jnp.float32)

    # weight_norm parameters v (direction) and g (magnitude); PyTorch init sets g = ||v||.
    v1 = jax.random.normal(k2, (C, C, K, K), jnp.float32) * 0.2
    g1 = jnp.sqrt(jnp.sum(v1 * v1, axis=(1, 2, 3)))
    v2 = jax.random.normal(k3, (C, C, K, K), jnp.float32) * 0.2
    g2 = jnp.sqrt(jnp.sum(v2 * v2, axis=(1, 2, 3)))

    out = jax.block_until_ready(basic_block(x, v1, g1, v2, g2))
    ref = ref_basic_block(x, v1, g1, v2, g2)
    assert out.shape == (N, C, H, W)
    max_err = float(jnp.max(jnp.abs(out - ref)))
    assert jnp.allclose(out, ref, atol=1e-3, rtol=1e-3), max_err
    print("KERNEL_OK")
</pallas_src>

<mosaic_0001>
module attributes {stable_mosaic.version = 11 : i64} {
  func.func @basic_block_kernel(%arg0: i32, %arg1: memref<2x4x256xf32, #tpu.memory_space<vmem>>, %arg2: memref<2x8x72xbf16, #tpu.memory_space<vmem>>, %arg3: memref<2x4x256xf32, #tpu.memory_space<vmem>>) attributes {dimension_semantics = [#tpu.dimension_semantics<parallel>], iteration_bounds = array<i64: 2>, scalar_prefetch = 0 : i64, scratch_operands = 0 : i64, tpu.core_type = #tpu.core_type<tc>, window_params = [{transform_indices = @transform_0, window_bounds = array<i64: 2, 4, 256>}, {pipeline_mode = #tpu.pipeline_mode<synchronous>, transform_indices = @transform_1, window_bounds = array<i64: 2, 8, 72>}, {transform_indices = @transform_2, window_bounds = array<i64: 2, 4, 256>}]} {
    %0 = tpu.iota {dimensions = array<i32: 1>} : vector<8x256xi32>
    %c15_i32 = arith.constant 15 : i32
    %1 = vector.broadcast %c15_i32 : i32 to vector<8x256xi32>
    %2 = arith.andi %0, %1 : vector<8x256xi32>
    %c1_i32 = arith.constant 1 : i32
    %3 = vector.broadcast %c1_i32 : i32 to vector<8x256xi32>
    %4 = arith.cmpi sge, %2, %3 : vector<8x256xi32>
    %c2_i32 = arith.constant 2 : i32
    %5 = vector.broadcast %c2_i32 : i32 to vector<8x256xi32>
    %6 = arith.cmpi sge, %2, %5 : vector<8x256xi32>
    %c0 = arith.constant 0 : index
    %c0_0 = arith.constant 0 : index
    %c0_1 = arith.constant 0 : index
    %7 = vector.load %arg2[%c0, %c0_0, %c0_1] : memref<2x8x72xbf16, #tpu.memory_space<vmem>>, vector<1x8x72xbf16>
    %8 = vector.shape_cast %7 : vector<1x8x72xbf16> to vector<8x72xbf16>
    %c1 = arith.constant 1 : index
    %c0_2 = arith.constant 0 : index
    %c0_3 = arith.constant 0 : index
    %9 = vector.load %arg2[%c1, %c0_2, %c0_3] : memref<2x8x72xbf16, #tpu.memory_space<vmem>>, vector<1x8x72xbf16>
    %10 = vector.shape_cast %9 : vector<1x8x72xbf16> to vector<8x72xbf16>
    %cst = arith.constant 0.000000e+00 : f32
    %11 = vector.broadcast %cst : f32 to vector<4x256xf32>
    %c0_4 = arith.constant 0 : index
    %c0_5 = arith.constant 0 : index
    %c0_6 = arith.constant 0 : index
    %12 = vector.load %arg1[%c0_4, %c0_5, %c0_6] : memref<2x4x256xf32, #tpu.memory_space<vmem>>, vector<1x4x256xf32>
    %13 = vector.shape_cast %12 : vector<1x4x256xf32> to vector<4x256xf32>
    %14 = tpu.concatenate %13, %11 in 0 : vector<4x256xf32>, vector<4x256xf32> -> vector<8x256xf32>
    %cst_7 = arith.constant 0.000000e+00 : f32
    %15 = vector.broadcast %cst_7 : f32 to vector<8x34xf32>
    %16 = vector.extract_strided_slice %14 {offsets = [0, 0], sizes = [8, 222], strides = [1, 1]} : vector<8x256xf32> to vector<8x222xf32>
    %17 = tpu.concatenate %15, %16 in 1 : vector<8x34xf32>, vector<8x222xf32> -> vector<8x256xf32>
    %cst_8 = arith.constant 0.000000e+00 : f32
    %18 = vector.broadcast %cst_8 : f32 to vector<8x256xf32>
    %19 = arith.select %6, %17, %18 : vector<8x256xi1>, vector<8x256xf32>
    %cst_9 = arith.constant 0.000000e+00 : f32
    %20 = vector.broadcast %cst_9 : f32 to vector<8x33xf32>
    %21 = vector.extract_strided_slice %14 {offsets = [0, 0], sizes = [8, 223], strides = [1, 1]} : vector<8x256xf32> to vector<8x223xf32>
    %22 = tpu.concatenate %20, %21 in 1 : vector<8x33xf32>, vector<8x223xf32> -> vector<8x256xf32>
    %cst_10 = arith.constant 0.000000e+00 : f32
    %23 = vector.broadcast %cst_10 : f32 to vector<8x256xf32>
    %24 = arith.select %4, %22, %23 : vector<8x256xi1>, vector<8x256xf32>
    %cst_11 = arith.constant 0.000000e+00 : f32
    %25 = vector.broadcast %cst_11 : f32 to vector<8x32xf32>
    %26 = vector.extract_strided_slice %14 {offsets = [0, 0], sizes = [8, 224], strides = [1, 1]} : vector<8x256xf32> to vector<8x224xf32>
    %27 = tpu.concatenate %25, %26 in 1 : vector<8x32xf32>, vector<8x224xf32> -> vector<8x256xf32>
    %cst_12 = arith.constant 0.000000e+00 : f32
    %28 = vector.broadcast %cst_12 : f32 to vector<8x18xf32>
    %29 = vector.extract_strided_slice %14 {offsets = [0, 0], sizes = [8, 238], strides = [1, 1]} : vector<8x256xf32> to vector<8x238xf32>
    %30 = tpu.concatenate %28, %29 in 1 : vector<8x18xf32>, vector<8x238xf32> -> vector<8x256xf32>
    %cst_13 = arith.constant 0.000000e+00 : f32
    %31 = vector.broadcast %cst_13 : f32 to vector<8x256xf32>
    %32 = arith.select %6, %30, %31 : vector<8x256xi1>, vector<8x256xf32>
    %cst_14 = arith.constant 0.000000e+00 : f32
    %33 = vector.broadcast %cst_14 : f32 to vector<8x17xf32>
    %34 = vector.extract_strided_slice %14 {offsets = [0, 0], sizes = [8, 239], strides = [1, 1]} : vector<8x256xf32> to vector<8x239xf32>
    %35 = tpu.concatenate %33, %34 in 1 : vector<8x17xf32>, vector<8x239xf32> -> vector<8x256xf32>
    %cst_15 = arith.constant 0.000000e+00 : f32
    %36 = vector.broadcast %cst_15 : f32 to vector<8x256xf32>
    %37 = arith.select %4, %35, %36 : vector<8x256xi1>, vector<8x256xf32>
    %cst_16 = arith.constant 0.000000e+00 : f32
    %38 = vector.broadcast %cst_16 : f32 to vector<8x16xf32>
    %39 = vector.extract_strided_slice %14 {offsets = [0, 0], sizes = [8, 240], strides = [1, 1]} : vector<8x256xf32> to vector<8x240xf32>
    %40 = tpu.concatenate %38, %39 in 1 : vector<8x16xf32>, vector<8x240xf32> -> vector<8x256xf32>
    %cst_17 = arith.constant 0.000000e+00 : f32
    %41 = vector.broadcast %cst_17 : f32 to vector<8x2xf32>
    %42 = vector.extract_strided_slice %14 {offsets = [0, 0], sizes = [8, 254], strides = [1, 1]} : vector<8x256xf32> to vector<8x254xf32>
    %43 = tpu.concatenate %41, %42 in 1 : vector<8x2xf32>, vector<8x254xf32> -> vector<8x256xf32>
    %cst_18 = arith.constant 0.000000e+00 : f32
    %44 = vector.broadcast %cst_18 : f32 to vector<8x256xf32>
    %45 = arith.select %6, %43, %44 : vector<8x256xi1>, vector<8x256xf32>
    %cst_19 = arith.constant 0.000000e+00 : f32
    %46 = vector.broadcast %cst_19 : f32 to vector<8x1xf32>
    %47 = vector.extract_strided_slice %14 {offsets = [0, 0], sizes = [8, 255], strides = [1, 1]} : vector<8x256xf32> to vector<8x255xf32>
    %48 = tpu.concatenate %46, %47 in 1 : vector<8x1xf32>, vector<8x255xf32> -> vector<8x256xf32>
    %cst_20 = arith.constant 0.000000e+00 : f32
    %49 = vector.broadcast %cst_20 : f32 to vector<8x256xf32>
    %50 = arith.select %4, %48, %49 : vector<8x256xi1>, vector<8x256xf32>
    %51 = tpu.concatenate %19, %24, %27, %32, %37, %40, %45, %50, %14 in 0 : vector<8x256xf32>, vector<8x256xf32>, vector<8x256xf32>, vector<8x256xf32>, vector<8x256xf32>, vector<8x256xf32>, vector<8x256xf32>, vector<8x256xf32>, vector<8x256xf32> -> vector<72x256xf32>
    %52 = arith.truncf %51 : vector<72x256xf32> to vector<72x256xbf16>
    %cst_21 = arith.constant dense<0.000000e+00> : vector<8x256xf32>
    %53 = tpu.matmul %8, %52, %cst_21 {dimension_numbers = #tpu.dot_dimension_numbers<[1], [0], [0], [1], [0, 0, 1, 1], [], []>} : vector<8x72xbf16>, vector<72x256xbf16>, vector<8x256xf32> -> vector<8x256xf32>
    %cst_22 = arith.constant 0.000000e+00 : f32
    %54 = vector.broadcast %cst_22 : f32 to vector<8x256xf32>
    %55 = arith.maximumf %53, %54 : vector<8x256xf32>
    %cst_23 = arith.constant 0.000000e+00 : f32
    %56 = vector.broadcast %cst_23 : f32 to vector<8x34xf32>
    %57 = vector.extract_strided_slice %55 {offsets = [0, 0], sizes = [8, 222], strides = [1, 1]} : vector<8x256xf32> to vector<8x222xf32>
    %58 = tpu.concatenate %56, %57 in 1 : vector<8x34xf32>, vector<8x222xf32> -> vector<8x256xf32>
    %cst_24 = arith.constant 0.000000e+00 : f32
    %59 = vector.broadcast %cst_24 : f32 to vector<8x256xf32>
    %60 = arith.select %6, %58, %59 : vector<8x256xi1>, vector<8x256xf32>
    %cst_25 = arith.constant 0.000000e+00 : f32
    %61 = vector.broadcast %cst_25 : f32 to vector<8x33xf32>
    %62 = vector.extract_strided_slice %55 {offsets = [0, 0], sizes = [8, 223], strides = [1, 1]} : vector<8x256xf32> to vector<8x223xf32>
    %63 = tpu.concatenate %61, %62 in 1 : vector<8x33xf32>, vector<8x223xf32> -> vector<8x256xf32>
    %cst_26 = arith.constant 0.000000e+00 : f32
    %64 = vector.broadcast %cst_26 : f32 to vector<8x256xf32>
    %65 = arith.select %4, %63, %64 : vector<8x256xi1>, vector<8x256xf32>
    %cst_27 = arith.constant 0.000000e+00 : f32
    %66 = vector.broadcast %cst_27 : f32 to vector<8x32xf32>
    %67 = vector.extract_strided_slice %55 {offsets = [0, 0], sizes = [8, 224], strides = [1, 1]} : vector<8x256xf32> to vector<8x224xf32>
    %68 = tpu.concatenate %66, %67 in 1 : vector<8x32xf32>, vector<8x224xf32> -> vector<8x256xf32>
    %cst_28 = arith.constant 0.000000e+00 : f32
    %69 = vector.broadcast %cst_28 : f32 to vector<8x18xf32>
    %70 = vector.extract_strided_slice %55 {offsets = [0, 0], sizes = [8, 238], strides = [1, 1]} : vector<8x256xf32> to vector<8x238xf32>
    %71 = tpu.concatenate %69, %70 in 1 : vector<8x18xf32>, vector<8x238xf32> -> vector<8x256xf32>
    %cst_29 = arith.constant 0.000000e+00 : f32
    %72 = vector.broadcast %cst_29 : f32 to vector<8x256xf32>
    %73 = arith.select %6, %71, %72 : vector<8x256xi1>, vector<8x256xf32>
    %cst_30 = arith.constant 0.000000e+00 : f32
    %74 = vector.broadcast %cst_30 : f32 to vector<8x17xf32>
    %75 = vector.extract_strided_slice %55 {offsets = [0, 0], sizes = [8, 239], strides = [1, 1]} : vector<8x256xf32> to vector<8x239xf32>
    %76 = tpu.concatenate %74, %75 in 1 : vector<8x17xf32>, vector<8x239xf32> -> vector<8x256xf32>
    %cst_31 = arith.constant 0.000000e+00 : f32
    %77 = vector.broadcast %cst_31 : f32 to vector<8x256xf32>
    %78 = arith.select %4, %76, %77 : vector<8x256xi1>, vector<8x256xf32>
    %cst_32 = arith.constant 0.000000e+00 : f32
    %79 = vector.broadcast %cst_32 : f32 to vector<8x16xf32>
    %80 = vector.extract_strided_slice %55 {offsets = [0, 0], sizes = [8, 240], strides = [1, 1]} : vector<8x256xf32> to vector<8x240xf32>
    %81 = tpu.concatenate %79, %80 in 1 : vector<8x16xf32>, vector<8x240xf32> -> vector<8x256xf32>
    %cst_33 = arith.constant 0.000000e+00 : f32
    %82 = vector.broadcast %cst_33 : f32 to vector<8x2xf32>
    %83 = vector.extract_strided_slice %55 {offsets = [0, 0], sizes = [8, 254], strides = [1, 1]} : vector<8x256xf32> to vector<8x254xf32>
    %84 = tpu.concatenate %82, %83 in 1 : vector<8x2xf32>, vector<8x254xf32> -> vector<8x256xf32>
    %cst_34 = arith.constant 0.000000e+00 : f32
    %85 = vector.broadcast %cst_34 : f32 to vector<8x256xf32>
    %86 = arith.select %6, %84, %85 : vector<8x256xi1>, vector<8x256xf32>
    %cst_35 = arith.constant 0.000000e+00 : f32
    %87 = vector.broadcast %cst_35 : f32 to vector<8x1xf32>
    %88 = vector.extract_strided_slice %55 {offsets = [0, 0], sizes = [8, 255], strides = [1, 1]} : vector<8x256xf32> to vector<8x255xf32>
    %89 = tpu.concatenate %87, %88 in 1 : vector<8x1xf32>, vector<8x255xf32> -> vector<8x256xf32>
    %cst_36 = arith.constant 0.000000e+00 : f32
    %90 = vector.broadcast %cst_36 : f32 to vector<8x256xf32>
    %91 = arith.select %4, %89, %90 : vector<8x256xi1>, vector<8x256xf32>
    %92 = tpu.concatenate %60, %65, %68, %73, %78, %81, %86, %91, %55 in 0 : vector<8x256xf32>, vector<8x256xf32>, vector<8x256xf32>, vector<8x256xf32>, vector<8x256xf32>, vector<8x256xf32>, vector<8x256xf32>, vector<8x256xf32>, vector<8x256xf32> -> vector<72x256xf32>
    %93 = arith.truncf %92 : vector<72x256xf32> to vector<72x256xbf16>
    %cst_37 = arith.constant dense<0.000000e+00> : vector<8x256xf32>
    %94 = tpu.matmul %10, %93, %cst_37 {dimension_numbers = #tpu.dot_dimension_numbers<[1], [0], [0], [1], [0, 0, 1, 1], [], []>} : vector<8x72xbf16>, vector<72x256xbf16>, vector<8x256xf32> -> vector<8x256xf32>
    %95 = vector.extract_strided_slice %94 {offsets = [0, 0], sizes = [4, 256], strides = [1, 1]} : vector<8x256xf32> to vector<4x256xf32>
    %96 = arith.addf %95, %13 : vector<4x256xf32>
    %cst_38 = arith.constant 0.000000e+00 : f32
    %97 = vector.broadcast %cst_38 : f32 to vector<4x256xf32>
    %98 = arith.maximumf %96, %97 : vector<4x256xf32>
    %c0_39 = arith.constant 0 : index
    %c0_40 = arith.constant 0 : index
    %c0_41 = arith.constant 0 : index
    %99 = vector.load %arg3[%c0_39, %c0_40, %c0_41] : memref<2x4x256xf32, #tpu.memory_space<vmem>>, vector<1x4x256xf32>
    %100 = vector.shape_cast %99 : vector<1x4x256xf32> to vector<4x256xf32>
    %101 = vector.shape_cast %98 : vector<4x256xf32> to vector<1x4x256xf32>
    tpu.vector_store %arg3[%c0_39, %c0_40, %c0_41], %101 {strides = array<i32>} : memref<2x4x256xf32, #tpu.memory_space<vmem>>, vector<1x4x256xf32>,
    %c1_42 = arith.constant 1 : index
    %c0_43 = arith.constant 0 : index
    %c0_44 = arith.constant 0 : index
    %102 = vector.load %arg1[%c1_42, %c0_43, %c0_44] : memref<2x4x256xf32, #tpu.memory_space<vmem>>, vector<1x4x256xf32>
    %103 = vector.shape_cast %102 : vector<1x4x256xf32> to vector<4x256xf32>
    %104 = tpu.concatenate %103, %11 in 0 : vector<4x256xf32>, vector<4x256xf32> -> vector<8x256xf32>
    %cst_45 = arith.constant 0.000000e+00 : f32
    %105 = vector.broadcast %cst_45 : f32 to vector<8x34xf32>
    %106 = vector.extract_strided_slice %104 {offsets = [0, 0], sizes = [8, 222], strides = [1, 1]} : vector<8x256xf32> to vector<8x222xf32>
    %107 = tpu.concatenate %105, %106 in 1 : vector<8x34xf32>, vector<8x222xf32> -> vector<8x256xf32>
    %cst_46 = arith.constant 0.000000e+00 : f32
    %108 = vector.broadcast %cst_46 : f32 to vector<8x256xf32>
    %109 = arith.select %6, %107, %108 : vector<8x256xi1>, vector<8x256xf32>
    %cst_47 = arith.constant 0.000000e+00 : f32
    %110 = vector.broadcast %cst_47 : f32 to vector<8x33xf32>
    %111 = vector.extract_strided_slice %104 {offsets = [0, 0], sizes = [8, 223], strides = [1, 1]} : vector<8x256xf32> to vector<8x223xf32>
    %112 = tpu.concatenate %110, %111 in 1 : vector<8x33xf32>, vector<8x223xf32> -> vector<8x256xf32>
    %cst_48 = arith.constant 0.000000e+00 : f32
    %113 = vector.broadcast %cst_48 : f32 to vector<8x256xf32>
    %114 = arith.select %4, %112, %113 : vector<8x256xi1>, vector<8x256xf32>
    %cst_49 = arith.constant 0.000000e+00 : f32
    %115 = vector.broadcast %cst_49 : f32 to vector<8x32xf32>
    %116 = vector.extract_strided_slice %104 {offsets = [0, 0], sizes = [8, 224], strides = [1, 1]} : vector<8x256xf32> to vector<8x224xf32>
    %117 = tpu.concatenate %115, %116 in 1 : vector<8x32xf32>, vector<8x224xf32> -> vector<8x256xf32>
    %cst_50 = arith.constant 0.000000e+00 : f32
    %118 = vector.broadcast %cst_50 : f32 to vector<8x18xf32>
    %119 = vector.extract_strided_slice %104 {offsets = [0, 0], sizes = [8, 238], strides = [1, 1]} : vector<8x256xf32> to vector<8x238xf32>
    %120 = tpu.concatenate %118, %119 in 1 : vector<8x18xf32>, vector<8x238xf32> -> vector<8x256xf32>
    %cst_51 = arith.constant 0.000000e+00 : f32
    %121 = vector.broadcast %cst_51 : f32 to vector<8x256xf32>
    %122 = arith.select %6, %120, %121 : vector<8x256xi1>, vector<8x256xf32>
    %cst_52 = arith.constant 0.000000e+00 : f32
    %123 = vector.broadcast %cst_52 : f32 to vector<8x17xf32>
    %124 = vector.extract_strided_slice %104 {offsets = [0, 0], sizes = [8, 239], strides = [1, 1]} : vector<8x256xf32> to vector<8x239xf32>
    %125 = tpu.concatenate %123, %124 in 1 : vector<8x17xf32>, vector<8x239xf32> -> vector<8x256xf32>
    %cst_53 = arith.constant 0.000000e+00 : f32
    %126 = vector.broadcast %cst_53 : f32 to vector<8x256xf32>
    %127 = arith.select %4, %125, %126 : vector<8x256xi1>, vector<8x256xf32>
    %cst_54 = arith.constant 0.000000e+00 : f32
    %128 = vector.broadcast %cst_54 : f32 to vector<8x16xf32>
    %129 = vector.extract_strided_slice %104 {offsets = [0, 0], sizes = [8, 240], strides = [1, 1]} : vector<8x256xf32> to vector<8x240xf32>
    %130 = tpu.concatenate %128, %129 in 1 : vector<8x16xf32>, vector<8x240xf32> -> vector<8x256xf32>
    %cst_55 = arith.constant 0.000000e+00 : f32
    %131 = vector.broadcast %cst_55 : f32 to vector<8x2xf32>
    %132 = vector.extract_strided_slice %104 {offsets = [0, 0], sizes = [8, 254], strides = [1, 1]} : vector<8x256xf32> to vector<8x254xf32>
    %133 = tpu.concatenate %131, %132 in 1 : vector<8x2xf32>, vector<8x254xf32> -> vector<8x256xf32>
    %cst_56 = arith.constant 0.000000e+00 : f32
    %134 = vector.broadcast %cst_56 : f32 to vector<8x256xf32>
    %135 = arith.select %6, %133, %134 : vector<8x256xi1>, vector<8x256xf32>
    %cst_57 = arith.constant 0.000000e+00 : f32
    %136 = vector.broadcast %cst_57 : f32 to vector<8x1xf32>
    %137 = vector.extract_strided_slice %104 {offsets = [0, 0], sizes = [8, 255], strides = [1, 1]} : vector<8x256xf32> to vector<8x255xf32>
    %138 = tpu.concatenate %136, %137 in 1 : vector<8x1xf32>, vector<8x255xf32> -> vector<8x256xf32>
    %cst_58 = arith.constant 0.000000e+00 : f32
    %139 = vector.broadcast %cst_58 : f32 to vector<8x256xf32>
    %140 = arith.select %4, %138, %139 : vector<8x256xi1>, vector<8x256xf32>
    %141 = tpu.concatenate %109, %114, %117, %122, %127, %130, %135, %140, %104 in 0 : vector<8x256xf32>, vector<8x256xf32>, vector<8x256xf32>, vector<8x256xf32>, vector<8x256xf32>, vector<8x256xf32>, vector<8x256xf32>, vector<8x256xf32>, vector<8x256xf32> -> vector<72x256xf32>
    %142 = arith.truncf %141 : vector<72x256xf32> to vector<72x256xbf16>
    %cst_59 = arith.constant dense<0.000000e+00> : vector<8x256xf32>
    %143 = tpu.matmul %8, %142, %cst_59 {dimension_numbers = #tpu.dot_dimension_numbers<[1], [0], [0], [1], [0, 0, 1, 1], [], []>} : vector<8x72xbf16>, vector<72x256xbf16>, vector<8x256xf32> -> vector<8x256xf32>
    %cst_60 = arith.constant 0.000000e+00 : f32
    %144 = vector.broadcast %cst_60 : f32 to vector<8x256xf32>
    %145 = arith.maximumf %143, %144 : vector<8x256xf32>
    %cst_61 = arith.constant 0.000000e+00 : f32
    %146 = vector.broadcast %cst_61 : f32 to vector<8x34xf32>
    %147 = vector.extract_strided_slice %145 {offsets = [0, 0], sizes = [8, 222], strides = [1, 1]} : vector<8x256xf32> to vector<8x222xf32>
    %148 = tpu.concatenate %146, %147 in 1 : vector<8x34xf32>, vector<8x222xf32> -> vector<8x256xf32>
    %cst_62 = arith.constant 0.000000e+00 : f32
    %149 = vector.broadcast %cst_62 : f32 to vector<8x256xf32>
    %150 = arith.select %6, %148, %149 : vector<8x256xi1>, vector<8x256xf32>
    %cst_63 = arith.constant 0.000000e+00 : f32
    %151 = vector.broadcast %cst_63 : f32 to vector<8x33xf32>
    %152 = vector.extract_strided_slice %145 {offsets = [0, 0], sizes = [8, 223], strides = [1, 1]} : vector<8x256xf32> to vector<8x223xf32>
    %153 = tpu.concatenate %151, %152 in 1 : vector<8x33xf32>, vector<8x223xf32> -> vector<8x256xf32>
    %cst_64 = arith.constant 0.000000e+00 : f32
    %154 = vector.broadcast %cst_64 : f32 to vector<8x256xf32>
    %155 = arith.select %4, %153, %154 : vector<8x256xi1>, vector<8x256xf32>
    %cst_65 = arith.constant 0.000000e+00 : f32
    %156 = vector.broadcast %cst_65 : f32 to vector<8x32xf32>
    %157 = vector.extract_strided_slice %145 {offsets = [0, 0], sizes = [8, 224], strides = [1, 1]} : vector<8x256xf32> to vector<8x224xf32>
    %158 = tpu.concatenate %156, %157 in 1 : vector<8x32xf32>, vector<8x224xf32> -> vector<8x256xf32>
    %cst_66 = arith.constant 0.000000e+00 : f32
    %159 = vector.broadcast %cst_66 : f32 to vector<8x18xf32>
    %160 = vector.extract_strided_slice %145 {offsets = [0, 0], sizes = [8, 238], strides = [1, 1]} : vector<8x256xf32> to vector<8x238xf32>
    %161 = tpu.concatenate %159, %160 in 1 : vector<8x18xf32>, vector<8x238xf32> -> vector<8x256xf32>
    %cst_67 = arith.constant 0.000000e+00 : f32
    %162 = vector.broadcast %cst_67 : f32 to vector<8x256xf32>
    %163 = arith.select %6, %161, %162 : vector<8x256xi1>, vector<8x256xf32>
    %cst_68 = arith.constant 0.000000e+00 : f32
    %164 = vector.broadcast %cst_68 : f32 to vector<8x17xf32>
    %165 = vector.extract_strided_slice %145 {offsets = [0, 0], sizes = [8, 239], strides = [1, 1]} : vector<8x256xf32> to vector<8x239xf32>
    %166 = tpu.concatenate %164, %165 in 1 : vector<8x17xf32>, vector<8x239xf32> -> vector<8x256xf32>
    %cst_69 = arith.constant 0.000000e+00 : f32
    %167 = vector.broadcast %cst_69 : f32 to vector<8x256xf32>
    %168 = arith.select %4, %166, %167 : vector<8x256xi1>, vector<8x256xf32>
    %cst_70 = arith.constant 0.000000e+00 : f32
    %169 = vector.broadcast %cst_70 : f32 to vector<8x16xf32>
    %170 = vector.extract_strided_slice %145 {offsets = [0, 0], sizes = [8, 240], strides = [1, 1]} : vector<8x256xf32> to vector<8x240xf32>
    %171 = tpu.concatenate %169, %170 in 1 : vector<8x16xf32>, vector<8x240xf32> -> vector<8x256xf32>
    %cst_71 = arith.constant 0.000000e+00 : f32
    %172 = vector.broadcast %cst_71 : f32 to vector<8x2xf32>
    %173 = vector.extract_strided_slice %145 {offsets = [0, 0], sizes = [8, 254], strides = [1, 1]} : vector<8x256xf32> to vector<8x254xf32>
    %174 = tpu.concatenate %172, %173 in 1 : vector<8x2xf32>, vector<8x254xf32> -> vector<8x256xf32>
    %cst_72 = arith.constant 0.000000e+00 : f32
    %175 = vector.broadcast %cst_72 : f32 to vector<8x256xf32>
    %176 = arith.select %6, %174, %175 : vector<8x256xi1>, vector<8x256xf32>
    %cst_73 = arith.constant 0.000000e+00 : f32
    %177 = vector.broadcast %cst_73 : f32 to vector<8x1xf32>
    %178 = vector.extract_strided_slice %145 {offsets = [0, 0], sizes = [8, 255], strides = [1, 1]} : vector<8x256xf32> to vector<8x255xf32>
    %179 = tpu.concatenate %177, %178 in 1 : vector<8x1xf32>, vector<8x255xf32> -> vector<8x256xf32>
    %cst_74 = arith.constant 0.000000e+00 : f32
    %180 = vector.broadcast %cst_74 : f32 to vector<8x256xf32>
    %181 = arith.select %4, %179, %180 : vector<8x256xi1>, vector<8x256xf32>
    %182 = tpu.concatenate %150, %155, %158, %163, %168, %171, %176, %181, %145 in 0 : vector<8x256xf32>, vector<8x256xf32>, vector<8x256xf32>, vector<8x256xf32>, vector<8x256xf32>, vector<8x256xf32>, vector<8x256xf32>, vector<8x256xf32>, vector<8x256xf32> -> vector<72x256xf32>
    %183 = arith.truncf %182 : vector<72x256xf32> to vector<72x256xbf16>
    %cst_75 = arith.constant dense<0.000000e+00> : vector<8x256xf32>
    %184 = tpu.matmul %10, %183, %cst_75 {dimension_numbers = #tpu.dot_dimension_numbers<[1], [0], [0], [1], [0, 0, 1, 1], [], []>} : vector<8x72xbf16>, vector<72x256xbf16>, vector<8x256xf32> -> vector<8x256xf32>
    %185 = vector.extract_strided_slice %184 {offsets = [0, 0], sizes = [4, 256], strides = [1, 1]} : vector<8x256xf32> to vector<4x256xf32>
    %186 = arith.addf %185, %103 : vector<4x256xf32>
    %cst_76 = arith.constant 0.000000e+00 : f32
    %187 = vector.broadcast %cst_76 : f32 to vector<4x256xf32>
    %188 = arith.maximumf %186, %187 : vector<4x256xf32>
    %c1_77 = arith.constant 1 : index
    %c0_78 = arith.constant 0 : index
    %c0_79 = arith.constant 0 : index
    %189 = vector.load %arg3[%c1_77, %c0_78, %c0_79] : memref<2x4x256xf32, #tpu.memory_space<vmem>>, vector<1x4x256xf32>
    %190 = vector.shape_cast %189 : vector<1x4x256xf32> to vector<4x256xf32>
    %191 = vector.shape_cast %188 : vector<4x256xf32> to vector<1x4x256xf32>
    tpu.vector_store %arg3[%c1_77, %c0_78, %c0_79], %191 {strides = array<i32>} : memref<2x4x256xf32, #tpu.memory_space<vmem>>, vector<1x4x256xf32>,
    return
  }
  func.func @transform_0(%arg0: i32) -> (i32, i32, i32) {
    %c0_i32 = arith.constant 0 : i32
    %c0_i32_0 = arith.constant 0 : i32
    %c0_i32_1 = arith.constant 0 : i32
    return %arg0, %c0_i32, %c0_i32_0 : i32, i32, i32
  }
  func.func @transform_1(%arg0: i32) -> (i32, i32, i32) {
    %c0_i32 = arith.constant 0 : i32
    %c0_i32_0 = arith.constant 0 : i32
    %c0_i32_1 = arith.constant 0 : i32
    %c0_i32_2 = arith.constant 0 : i32
    return %c0_i32, %c0_i32_0, %c0_i32_1 : i32, i32, i32
  }
  func.func @transform_2(%arg0: i32) -> (i32, i32, i32) {
    %c0_i32 = arith.constant 0 : i32
    %c0_i32_0 = arith.constant 0 : i32
    %c0_i32_1 = arith.constant 0 : i32
    return %arg0, %c0_i32, %c0_i32_0 : i32, i32, i32
  }
}

</mosaic_0001>

<llo_original>
// kernel: tpu_custom_call.1
$region0: #{tpu_custom_call.1}
  #allocation0 [shape = 'u32[]', space=smem, size = 0x4, offset = 0x4, fixed_abs, tag = 'smem constant byte address 0x4 - core index']
  #allocation1 [shape = 'u32[144,128]{1,0:T(1,128)}', space=vmem, size = 0x12000, scoped, tag = 'internal scratch']
  %s0 = inlined_call_operand.hbm [shape: f32[4,4,256], index: 0, kind: input, shape index: {}]
  %s1 = inlined_call_operand.hbm [shape: bf16[2,8,72], index: 1, kind: input, shape index: {}]
  %s2 = inlined_call_operand.hbm [shape: f32[4,4,256], index: 2, kind: output, shape index: {}]
  %s3 = sld [smem:[#allocation0]]
  $region49: #{tpu_custom_call.1} parent=0
    _
  %s5 = ssub.s32 1, %s3
  %s6 = scalar_select 0, %s5, %s3
  $region1: #{tpu_custom_call.1} parent=0
    #allocation2 [shape = 'u8[16384]{0}', space=vmem, size = 0x4000, scoped, tag = 'input window, operand 0']
    #allocation3 [shape = 's32[2]{0}', space=sflag, size = 0x8, scoped, tag = 'scoped memory for tpu_custom_call.1']
    #allocation4 [shape = 's32[2]{0}', space=sflag, size = 0x8, scoped, tag = 'scoped memory for tpu_custom_call.1']
    #allocation5 [shape = 'u8[4096]{0}', space=vmem, size = 0x1000, scoped, tag = 'input window, operand 1, single buffered']
    #allocation6 [shape = 's32[1]{0}', space=sflag, size = 0x4, scoped, tag = 'scoped memory for tpu_custom_call.1']
    #allocation7 [shape = 'u8[16384]{0}', space=vmem, size = 0x4000, scoped, tag = 'output window, operand 0']
    %7 = vsyncpa [#allocation3], 0
    %s8 = scalar_lea.sflag [#allocation3], 1
    %9 = vsyncpa %s8, 0
    %10 = vsyncpa [#allocation6], 0
    %11 = vsyncpa [#allocation4], 0
    %s12 = scalar_lea.sflag [#allocation4], 1
    %13 = vsyncpa %s12, 0
    loop: start=0, step=1, limit=4
    $region2: #{tpu_custom_call.1} parent=1 // loop_pre_header
      _
    $region3: #{tpu_custom_call.1} parent=1 // loop_header
      %s15 = sphi 0, %s19
      %p16 = scmp.ge.s32.totalorder %s15, 4
      %s25 = sphi 0, %s27
      %s28 = sphi 0, %s25
      %s29 = sphi 0, %s28
      %s45 = sphi 0, %s29
      %s49 = sphi 0, %s49
      %s51 = sphi 0, %s49
      %s52 = sphi 0, %s51
      %s66 = sphi 0, %s52
      %s72 = sphi 0, %s74
      %s75 = sphi 0, %s72
      %s76 = sphi 0, %s75
      %s92 = sphi 0, %s76
    $region4: #{tpu_custom_call.1} parent=1 // loop_header_branch
      %18 = sbr.rel (%p16) target = $region8
    $region5: #{tpu_custom_call.1} parent=1 // loop_body
      %s20 = ssub.s32 %s15, 1
      %s21 = ssub.s32 %s15, 2
      %s22 = sadd.s32 %s15, 1
      %s23 = ssub.s32 %s15, %s22
      %p24 = scmp.eq.s32.totalorder %s23, 0
      %s26 = sadd.s32 %s25, 1
      %s27 = scalar_select %p24, %s25, %s26
      %p30 = pneg %p24
      %p31 = scmp.eq.s32.totalorder %s15, 1
      %p32 = por %p30, %p31
      %p33 = scmp.ne.s32.totalorder %s25, %s28
      %p34 = scmp.eq.s32.totalorder %s15, 0
      %p35 = por %p33, %p34
      %p36 = scmp.ne.s32.totalorder %s25, %s28
      %p37 = scmp.eq.s32.totalorder %s20, 1
      %p38 = por %p36, %p37
      %p39 = scmp.ne.s32.totalorder %s28, %s29
      %p40 = scmp.eq.s32.totalorder %s20, 0
      %p41 = por %p39, %p40
      %p42 = scmp.ne.s32.totalorder %s28, %s29
      %p43 = scmp.eq.s32.totalorder %s21, 1
      %p44 = por %p42, %p43
      %p46 = scmp.ne.s32.totalorder %s29, %s45
      %p47 = scmp.eq.s32.totalorder %s21, 0
      %p48 = por %p46, %p47
      %s50 = sadd.s32 %s49, 1
      %p53 = scmp.eq.s32.totalorder %s15, 1
      %p54 = scmp.ne.s32.totalorder %s49, %s51
      %p55 = scmp.eq.s32.totalorder %s15, 0
      %p56 = por %p54, %p55
      %p57 = scmp.ne.s32.totalorder %s49, %s51
      %p58 = scmp.eq.s32.totalorder %s20, 1
      %p59 = por %p57, %p58
      %p60 = scmp.ne.s32.totalorder %s51, %s52
      %p61 = scmp.eq.s32.totalorder %s20, 0
      %p62 = por %p60, %p61
      %p63 = scmp.ne.s32.totalorder %s51, %s52
      %p64 = scmp.eq.s32.totalorder %s21, 1
      %p65 = por %p63, %p64
      %p67 = scmp.ne.s32.totalorder %s52, %s66
      %p68 = scmp.eq.s32.totalorder %s21, 0
      %p69 = por %p67, %p68
      %s70 = ssub.s32 %s15, %s22
      %p71 = scmp.eq.s32.totalorder %s70, 0
      %s73 = sadd.s32 %s72, 1
      %s74 = scalar_select %p71, %s72, %s73
      %p77 = pneg %p71
      %p78 = scmp.eq.s32.totalorder %s15, 1
      %p79 = por %p77, %p78
      %p80 = scmp.ne.s32.totalorder %s72, %s75
      %p81 = scmp.eq.s32.totalorder %s15, 0
      %p82 = por %p80, %p81
      %p83 = scmp.ne.s32.totalorder %s72, %s75
      %p84 = scmp.eq.s32.totalorder %s20, 1
      %p85 = por %p83, %p84
      %p86 = scmp.ne.s32.totalorder %s75, %s76
      %p87 = scmp.eq.s32.totalorder %s20, 0
      %p88 = por %p86, %p87
      %p89 = scmp.ne.s32.totalorder %s75, %s76
      %p90 = scmp.eq.s32.totalorder %s21, 1
      %p91 = por %p89, %p90
      %p93 = scmp.ne.s32.totalorder %s76, %s92
      %p94 = scmp.eq.s32.totalorder %s21, 0
      %p95 = por %p93, %p94
      %p96 = scmp.le.s32.totalorder 1, %s15
      %p97 = scmp.lt.s32.totalorder %s15, 3
      %p98 = pnand %p96, %p97
      %p99 = pneg %p98
      // Predicated region
      $region9: #{tpu_custom_call.1} parent=5 // pred_check
        _
      $region10: #{tpu_custom_call.1} parent=5 // pred_check_branch
        %101 = sbr.rel (%p98) target = $region12
      $region11: #{tpu_custom_call.1} parent=5 // pred_region
        %s102 = ssub.s32 %s15, 1
        // Predicated region
        $region13: #{tpu_custom_call.1} parent=11 // pred_check
          %p103 = pneg %p62
        $region14: #{tpu_custom_call.1} parent=11 // pred_check_branch
          %105 = sbr.rel (%p103) target = $region16
        $region15: #{tpu_custom_call.1} parent=11 // pred_region
          %s107 = ssub.s32 128, 128
          %108 = vsyncadd [#allocation6], %s107
          %s109 = sshll.u32 [#allocation5], 4
          %s110 = int_to_ptr.vmem [resolvable:$true] %s109
          %115 = dma.hbm_to_vmem [thread:$0]  %s1, 128, %s110, [#allocation6], 64, 64, 4
        $region16: #{tpu_custom_call.1} parent=11 // pred_fallthru
          _
      $region12: #{tpu_custom_call.1} parent=5 // pred_fallthru
        _
      %p116 = scmp.lt.s32.totalorder %s15, 2
      // Predicated region
      $region17: #{tpu_custom_call.1} parent=5 // pred_check
        %p117 = pneg %p116
      $region18: #{tpu_custom_call.1} parent=5 // pred_check_branch
        %119 = sbr.rel (%p117) target = $region20
      $region19: #{tpu_custom_call.1} parent=5 // pred_region
        // Predicated region
        $region21: #{tpu_custom_call.1} parent=19 // pred_check
          %p120 = pneg %p35
        $region22: #{tpu_custom_call.1} parent=19 // pred_check_branch
          %122 = sbr.rel (%p120) target = $region24
        $region23: #{tpu_custom_call.1} parent=19 // pred_region
          %s123 = sand.u32 %s25, 1
          %s124 = scalar_lea.sflag [#allocation3], %s123
          %s125 = sand.u32 %s25, 1
          %s126 = smul.addr %s125, 16
          %s127 = scalar_lea.vmem [#allocation2], %s126
          %s128 = smul.u32 2, %s15
          %s130 = ssub.s32 256, 256
          %131 = vsyncadd %s124, %s130
          %s132 = smul.addr %s128, 2
          %s133 = smul.addr %s132, 64
          %s134 = scalar_lea.hbm %s0, %s133
          %s135 = sshll.u32 %s127, 4
          %s136 = int_to_ptr.vmem [resolvable:$true] %s135
          %141 = dma.hbm_to_vmem [thread:$0]  %s134, 256, %s136, %s124, 128, 128, 8
        $region24: #{tpu_custom_call.1} parent=19 // pred_fallthru
          _
      $region20: #{tpu_custom_call.1} parent=5 // pred_fallthru
        _
      %p142 = scmp.le.s32.totalorder 1, %s15
      %p143 = scmp.lt.s32.totalorder %s15, 3
      %p144 = pnand %p142, %p143
      %p145 = pneg %p144
      // Predicated region
      $region25: #{tpu_custom_call.1} parent=5 // pred_check
        _
      $region26: #{tpu_custom_call.1} parent=5 // pred_check_branch
        %147 = sbr.rel (%p144) target = $region28
      $region27: #{tpu_custom_call.1} parent=5 // pred_region
        %s148 = ssub.s32 %s15, 1
        %s149 = sand.u32 %s28, 1
        %s150 = scalar_lea.sflag [#allocation3], %s149
        %s151 = sand.u32 %s28, 1
        %s152 = smul.addr %s151, 16
        %s153 = scalar_lea.vmem [#allocation2], %s152
        // Predicated region
        $region29: #{tpu_custom_call.1} parent=27 // pred_check
          %p154 = pneg %p41
        $region30: #{tpu_custom_call.1} parent=27 // pred_check_branch
          %156 = sbr.rel (%p154) target = $region32
        $region31: #{tpu_custom_call.1} parent=27 // pred_region
          %157 = dma.done %s150, 256
        $region32: #{tpu_custom_call.1} parent=27 // pred_fallthru
          _
        // Predicated region
        $region33: #{tpu_custom_call.1} parent=27 // pred_check
          %p158 = pneg %p62
        $region34: #{tpu_custom_call.1} parent=27 // pred_check_branch
          %160 = sbr.rel (%p158) target = $region36
        $region35: #{tpu_custom_call.1} parent=27 // pred_region
          %161 = dma.done [#allocation6], 128
        $region36: #{tpu_custom_call.1} parent=27 // pred_fallthru
          _
        %s162 = sand.u32 %s28, 1
        %s163 = scalar_lea.sflag [#allocation3], %s162
        %s164 = sand.u32 %s28, 1
        %s165 = smul.addr %s164, 16
        %s166 = scalar_lea.vmem [#allocation2], %s165
        %p167 = pneg %p41
        %p168 = pneg %p38
        %p169 = pneg %p62
        %p170 = pneg %p59
        %p171 = pneg %p88
        %p172 = pneg %p85
        %s173 = sand.u32 %s75, 1
        %s174 = scalar_lea.sflag [#allocation4], %s173
        %s175 = sand.u32 %s75, 1
        %s176 = smul.addr %s175, 16
        %s177 = scalar_lea.vmem [#allocation7], %s176
        %s178 = smul.u32 2, %s20
        %s179 = smul.u32 2, %s20
        %v181 = vlaneseq
        %v182 = vand.u32 %v181, 127
        %v183 = vadd.s32 %v182, 128
        %v184 = vand.u32 %v182, 15
        %v185 = vand.u32 %v183, 15
        %vm186 = vcmp.ge.s32.totalorder %v184, 1
        %vm187 = vcmp.ge.s32.totalorder %v185, 1
        %vm188 = vcmp.ge.s32.totalorder %v184, 2
        %vm189 = vcmp.ge.s32.totalorder %v185, 2
        %v190 = vld [vmem:[#allocation5] sm:$0xf]
        %s191 = scalar_lea.vmem [#allocation5], 4
        %v192 = vld [vmem:[%s191] sm:$0xf]
        %v193 = vld [vmem:[%s153] sm:$0xff]
        %v195 = vcombine.high %v193, %v193
        %vm197 = vcmask 1043456
        %v198 = vsel %vm197, %v193, 0.0
        %v199 = vsel %vm197, %v195, 0.0
        %202 = vrot.lane.b32.xlu0 %v198, 34
        %v203 = vpop.permute.xlu0 %202
        %204 = vrot.lane.b32.xlu0 %v199, 34
        %v205 = vpop.permute.xlu0 %204
        %vm206 = vcmask 277504
        %v207 = vsel %vm206, %v203, %v205
        %v210 = vsel %vm206, 0.0, %v203
        %v211 = vsel %vm188, %v210, 0.0
        %v212 = vsel %vm189, %v207, 0.0
        %213 = vrot.lane.b32.xlu0 %v198, 33
        %v214 = vpop.permute.xlu0 %213
        %215 = vrot.lane.b32.xlu0 %v199, 33
        %v216 = vpop.permute.xlu0 %215
        %vm217 = vcmask 269312
        %v218 = vsel %vm217, %v214, %v216
        %v221 = vsel %vm217, 0.0, %v214
        %v222 = vsel %vm186, %v221, 0.0
        %v223 = vsel %vm187, %v218, 0.0
        %224 = vrot.lane.b32.xlu0 %v198, 32
        %v225 = vpop.permute.xlu0 %224
        %226 = vrot.lane.b32.xlu0 %v199, 32
        %v227 = vpop.permute.xlu0 %226
        %vm228 = vcmask 261120
        %v229 = vsel %vm228, %v225, %v227
        %v232 = vsel %vm228, 0.0, %v225
        %233 = vrot.lane.b32.xlu0 %v198, 18
        %v234 = vpop.permute.xlu0 %233
        %235 = vrot.lane.b32.xlu0 %v199, 18
        %v236 = vpop.permute.xlu0 %235
        %vm237 = vcmask 146432
        %v238 = vsel %vm237, %v234, %v236
        %v241 = vsel %vm237, 0.0, %v234
        %v242 = vsel %vm188, %v241, 0.0
        %v243 = vsel %vm189, %v238, 0.0
        %244 = vrot.lane.b32.xlu0 %v198, 17
        %v245 = vpop.permute.xlu0 %244
        %246 = vrot.lane.b32.xlu0 %v199, 17
        %v247 = vpop.permute.xlu0 %246
        %vm248 = vcmask 138240
        %v249 = vsel %vm248, %v245, %v247
        %v252 = vsel %vm248, 0.0, %v245
        %v253 = vsel %vm186, %v252, 0.0
        %v254 = vsel %vm187, %v249, 0.0
        %255 = vrot.lane.b32.xlu0 %v198, 16
        %v256 = vpop.permute.xlu0 %255
        %257 = vrot.lane.b32.xlu0 %v199, 16
        %v258 = vpop.permute.xlu0 %257
        %vm259 = vcmask 130048
        %v260 = vsel %vm259, %v256, %v258
        %v263 = vsel %vm259, 0.0, %v256
        %264 = vrot.lane.b32.xlu0 %v198, 2
        %v265 = vpop.permute.xlu0 %264
        %266 = vrot.lane.b32.xlu0 %v199, 2
        %v267 = vpop.permute.xlu0 %266
        %vm268 = vcmask 15360
        %v269 = vsel %vm268, %v265, %v267
        %v272 = vsel %vm268, 0.0, %v265
        %v273 = vsel %vm188, %v272, 0.0
        %v274 = vsel %vm189, %v269, 0.0
        %275 = vrot.lane.b32.xlu0 %v198, 1
        %v276 = vpop.permute.xlu0 %275
        %277 = vrot.lane.b32.xlu0 %v199, 1
        %v278 = vpop.permute.xlu0 %277
        %vm279 = vcmask 7168
        %v280 = vsel %vm279, %v276, %v278
        %v283 = vsel %vm279, 0.0, %v276
        %v284 = vsel %vm186, %v283, 0.0
        %v285 = vsel %vm187, %v280, 0.0
        %v286 = vpack.c.bf16 %v222, %v211
        %v287 = vpack.c.bf16 %v223, %v212
        %v288 = vpack.c.bf16 %v242, %v232
        %v289 = vpack.c.bf16 %v243, %v229
        %v290 = vpack.c.bf16 %v263, %v253
        %v291 = vpack.c.bf16 %v260, %v254
        %v292 = vpack.c.bf16 %v284, %v273
        %v293 = vpack.c.bf16 %v285, %v274
        %v294 = vpack.c.bf16 %v198, %v198
        %v295 = vpack.c.bf16 %v199, %v199
        %vm296 = vcmask 588800
        %v298 = vsel %vm296, %v190, 0
        %v301 = vsel %vm197, %v294, 0
        %v304 = vsel %vm197, %v295, 0
        %306 = vmatprep.subr.bf16.mxu0 %v287
        %307 = vmatpush1.bf16.msra.mxu0 %v286
        %308 = vmatprep.subr.bf16.mxu0 %v289
        %309 = vmatpush1.bf16.msra.mxu0 %v288
        %310 = vmatprep.subr.bf16.mxu0 %v291
        %311 = vmatpush1.bf16.msra.mxu0 %v290
        %312 = vmatprep.subr.bf16.mxu0 %v293
        %313 = vmatpush1.bf16.msra.mxu0 %v292
        %314 = vmatprep.subr.bf16.mxu0 %v304
        %315 = vmatpush1.bf16.msra.mxu0 %v301
        %316 = vmatprep.subr.bf16.mxu0 0
        %317 = vmatpush1.bf16.msra.mxu0 0
        %318 = vmatprep.subr.bf16.mxu0 0
        %319 = vmatpush1.bf16.msra.mxu0 0
        %320 = vmatprep.subr.bf16.mxu0 0
        %321 = vmatpush1.bf16.msra.mxu0 0
        %322 = vmatprep.subr.bf16.mxu0 0
        %323 = vmatpush1.bf16.msra.mxu0 0
        %324 = vmatprep.subr.bf16.mxu0 0
        %325 = vmatpush1.bf16.msra.mxu0 0
        %326 = vmatprep.subr.bf16.mxu0 0
        %327 = vmatpush1.bf16.msra.mxu0 0
        %328 = vmatprep.subr.bf16.mxu0 0
        %329 = vmatpush1.bf16.msra.mxu0 0
        %330 = vmatprep.subr.bf16.mxu0 0
        %331 = vmatpush1.bf16.msra.mxu0 0
        %332 = vmatprep.subr.bf16.mxu0 0
        %333 = vmatpush1.bf16.msra.mxu0 0
        %334 = vmatprep.subr.bf16.mxu0 0
        %335 = vmatpush1.bf16.msra.mxu0 0
        %336 = vmatprep.subr.bf16.mxu0 0
        %337 = vmatpush1.bf16.msra.mxu0 0
        %338 = vmatprep.mubr.bf16.mxu0 0
        %339 = vmatmul.mubr.bf16.gmra.mrb[0].mxu0 %v298
        %v340 = vpop.f32.mrb[0].mxu0
        %v341 = vadd.f32 0.0, %v340
        %v342 = vpop.f32.mrb[0].mxu0
        %v343 = vadd.f32 0.0, %v342
        %v344 = vpop.f32.mrb[0].mxu0
        %v345 = vpop.f32.mrb[0].mxu0
        %346 = vdwg.mxu0
        %v347 = vmax.f32 %v341, 0.0
        %v348 = vmax.f32 %v343, 0.0
        %351 = vrot.lane.b32.xlu0 %v347, 34
        %v352 = vpop.permute.xlu0 %351
        %353 = vrot.lane.b32.xlu0 %v348, 34
        %v354 = vpop.permute.xlu0 %353
        %v355 = vsel %vm206, %v352, %v354
        %v358 = vsel %vm206, 0.0, %v352
        %v359 = vsel %vm188, %v358, 0.0
        %v360 = vsel %vm189, %v355, 0.0
        %361 = vrot.lane.b32.xlu0 %v347, 33
        %v362 = vpop.permute.xlu0 %361
        %363 = vrot.lane.b32.xlu0 %v348, 33
        %v364 = vpop.permute.xlu0 %363
        %v365 = vsel %vm217, %v362, %v364
        %v368 = vsel %vm217, 0.0, %v362
        %v369 = vsel %vm186, %v368, 0.0
        %v370 = vsel %vm187, %v365, 0.0
        %371 = vrot.lane.b32.xlu0 %v347, 32
        %v372 = vpop.permute.xlu0 %371
        %373 = vrot.lane.b32.xlu0 %v348, 32
        %v374 = vpop.permute.xlu0 %373
        %v375 = vsel %vm228, %v372, %v374
        %v378 = vsel %vm228, 0.0, %v372
        %379 = vrot.lane.b32.xlu0 %v347, 18
        %v380 = vpop.permute.xlu0 %379
        %381 = vrot.lane.b32.xlu0 %v348, 18
        %v382 = vpop.permute.xlu0 %381
        %v383 = vsel %vm237, %v380, %v382
        %v386 = vsel %vm237, 0.0, %v380
        %v387 = vsel %vm188, %v386, 0.0
        %v388 = vsel %vm189, %v383, 0.0
        %389 = vrot.lane.b32.xlu0 %v347, 17
        %v390 = vpop.permute.xlu0 %389
        %391 = vrot.lane.b32.xlu0 %v348, 17
        %v392 = vpop.permute.xlu0 %391
        %v393 = vsel %vm248, %v390, %v392
        %v396 = vsel %vm248, 0.0, %v390
        %v397 = vsel %vm186, %v396, 0.0
        %v398 = vsel %vm187, %v393, 0.0
        %399 = vrot.lane.b32.xlu0 %v347, 16
        %v400 = vpop.permute.xlu0 %399
        %401 = vrot.lane.b32.xlu0 %v348, 16
        %v402 = vpop.permute.xlu0 %401
        %v403 = vsel %vm259, %v400, %v402
        %v406 = vsel %vm259, 0.0, %v400
        %407 = vrot.lane.b32.xlu0 %v347, 2
        %v408 = vpop.permute.xlu0 %407
        %409 = vrot.lane.b32.xlu0 %v348, 2
        %v410 = vpop.permute.xlu0 %409
        %v411 = vsel %vm268, %v408, %v410
        %v414 = vsel %vm268, 0.0, %v408
        %v415 = vsel %vm188, %v414, 0.0
        %v416 = vsel %vm189, %v411, 0.0
        %417 = vrot.lane.b32.xlu0 %v347, 1
        %v418 = vpop.permute.xlu0 %417
        %419 = vrot.lane.b32.xlu0 %v348, 1
        %v420 = vpop.permute.xlu0 %419
        %v421 = vsel %vm279, %v418, %v420
        %v424 = vsel %vm279, 0.0, %v418
        %v425 = vsel %vm186, %v424, 0.0
        %v426 = vsel %vm187, %v421, 0.0
        %v427 = vpack.c.bf16 %v369, %v359
        %v428 = vpack.c.bf16 %v370, %v360
        %v429 = vpack.c.bf16 %v387, %v378
        %v430 = vpack.c.bf16 %v388, %v375
        %v431 = vpack.c.bf16 %v406, %v397
        %v432 = vpack.c.bf16 %v403, %v398
        %v433 = vpack.c.bf16 %v425, %v415
        %v434 = vpack.c.bf16 %v426, %v416
        %v435 = vpack.c.bf16 %v347, %v347
        %v436 = vpack.c.bf16 %v348, %v348
        %v438 = vsel %vm296, %v192, 0
        %v441 = vsel %vm197, %v435, 0
        %v444 = vsel %vm197, %v436, 0
        %446 = vmatprep.subr.bf16.mxu0 %v428
        %447 = vmatpush1.bf16.msra.mxu0 %v427
        %448 = vmatprep.subr.bf16.mxu0 %v430
        %449 = vmatpush1.bf16.msra.mxu0 %v429
        %450 = vmatprep.subr.bf16.mxu0 %v432
        %451 = vmatpush1.bf16.msra.mxu0 %v431
        %452 = vmatprep.subr.bf16.mxu0 %v434
        %453 = vmatpush1.bf16.msra.mxu0 %v433
        %454 = vmatprep.subr.bf16.mxu0 %v444
        %455 = vmatpush1.bf16.msra.mxu0 %v441
        %456 = vmatprep.subr.bf16.mxu0 0
        %457 = vmatpush1.bf16.msra.mxu0 0
        %458 = vmatprep.subr.bf16.mxu0 0
        %459 = vmatpush1.bf16.msra.mxu0 0
        %460 = vmatprep.subr.bf16.mxu0 0
        %461 = vmatpush1.bf16.msra.mxu0 0
        %462 = vmatprep.subr.bf16.mxu0 0
        %463 = vmatpush1.bf16.msra.mxu0 0
        %464 = vmatprep.subr.bf16.mxu0 0
        %465 = vmatpush1.bf16.msra.mxu0 0
        %466 = vmatprep.subr.bf16.mxu0 0
        %467 = vmatpush1.bf16.msra.mxu0 0
        %468 = vmatprep.subr.bf16.mxu0 0
        %469 = vmatpush1.bf16.msra.mxu0 0
        %470 = vmatprep.subr.bf16.mxu0 0
        %471 = vmatpush1.bf16.msra.mxu0 0
        %472 = vmatprep.subr.bf16.mxu0 0
        %473 = vmatpush1.bf16.msra.mxu0 0
        %474 = vmatprep.subr.bf16.mxu0 0
        %475 = vmatpush1.bf16.msra.mxu0 0
        %476 = vmatprep.subr.bf16.mxu0 0
        %477 = vmatpush1.bf16.msra.mxu0 0
        %478 = vmatprep.mubr.bf16.mxu0 0
        %479 = vmatmul.mubr.bf16.gmra.mrb[0].mxu0 %v438
        %v480 = vpop.f32.mrb[0].mxu0
        %v481 = vadd.f32 0.0, %v480
        %v482 = vpop.f32.mrb[0].mxu0
        %v483 = vadd.f32 0.0, %v482
        %v484 = vpop.f32.mrb[0].mxu0
        %v485 = vpop.f32.mrb[0].mxu0
        %486 = vdwg.mxu0
        %v487 = vadd.f32 %v481, %v193
        %v488 = vadd.f32 %v483, %v195
        %v489 = vmax.f32 %v487, 0.0
        %v490 = vmax.f32 %v488, 0.0
        %v493 = vcombine.low %v489, %v490
        %495 = vst [vmem:[%s177] sm:$0xff] %v493
        %s496 = scalar_lea.vmem %s153, 8 [#allocation2]
        %v497 = vld [vmem:[%s496] sm:$0xff]
        %v499 = vcombine.high %v497, %v497
        %v501 = vsel %vm197, %v497, 0.0
        %v502 = vsel %vm197, %v499, 0.0
        %505 = vrot.lane.b32.xlu0 %v501, 34
        %v506 = vpop.permute.xlu0 %505
        %507 = vrot.lane.b32.xlu0 %v502, 34
        %v508 = vpop.permute.xlu0 %507
        %v509 = vsel %vm206, %v506, %v508
        %v512 = vsel %vm206, 0.0, %v506
        %v513 = vsel %vm188, %v512, 0.0
        %v514 = vsel %vm189, %v509, 0.0
        %515 = vrot.lane.b32.xlu0 %v501, 33
        %v516 = vpop.permute.xlu0 %515
        %517 = vrot.lane.b32.xlu0 %v502, 33
        %v518 = vpop.permute.xlu0 %517
        %v519 = vsel %vm217, %v516, %v518
        %v522 = vsel %vm217, 0.0, %v516
        %v523 = vsel %vm186, %v522, 0.0
        %v524 = vsel %vm187, %v519, 0.0
        %525 = vrot.lane.b32.xlu0 %v501, 32
        %v526 = vpop.permute.xlu0 %525
        %527 = vrot.lane.b32.xlu0 %v502, 32
        %v528 = vpop.permute.xlu0 %527
        %v529 = vsel %vm228, %v526, %v528
        %v532 = vsel %vm228, 0.0, %v526
        %533 = vrot.lane.b32.xlu0 %v501, 18
        %v534 = vpop.permute.xlu0 %533
        %535 = vrot.lane.b32.xlu0 %v502, 18
        %v536 = vpop.permute.xlu0 %535
        %v537 = vsel %vm237, %v534, %v536
        %v540 = vsel %vm237, 0.0, %v534
        %v541 = vsel %vm188, %v540, 0.0
        %v542 = vsel %vm189, %v537, 0.0
        %543 = vrot.lane.b32.xlu0 %v501, 17
        %v544 = vpop.permute.xlu0 %543
        %545 = vrot.lane.b32.xlu0 %v502, 17
        %v546 = vpop.permute.xlu0 %545
        %v547 = vsel %vm248, %v544, %v546
        %v550 = vsel %vm248, 0.0, %v544
        %v551 = vsel %vm186, %v550, 0.0
        %v552 = vsel %vm187, %v547, 0.0
        %553 = vrot.lane.b32.xlu0 %v501, 16
        %v554 = vpop.permute.xlu0 %553
        %555 = vrot.lane.b32.xlu0 %v502, 16
        %v556 = vpop.permute.xlu0 %555
        %v557 = vsel %vm259, %v554, %v556
        %v560 = vsel %vm259, 0.0, %v554
        %561 = vrot.lane.b32.xlu0 %v501, 2
        %v562 = vpop.permute.xlu0 %561
        %563 = vrot.lane.b32.xlu0 %v502, 2
        %v564 = vpop.permute.xlu0 %563
        %v565 = vsel %vm268, %v562, %v564
        %v568 = vsel %vm268, 0.0, %v562
        %v569 = vsel %vm188, %v568, 0.0
        %v570 = vsel %vm189, %v565, 0.0
        %571 = vrot.lane.b32.xlu0 %v501, 1
        %v572 = vpop.permute.xlu0 %571
        %573 = vrot.lane.b32.xlu0 %v502, 1
        %v574 = vpop.permute.xlu0 %573
        %v575 = vsel %vm279, %v572, %v574
        %v578 = vsel %vm279, 0.0, %v572
        %v579 = vsel %vm186, %v578, 0.0
        %v580 = vsel %vm187, %v575, 0.0
        %v581 = vpack.c.bf16 %v523, %v513
        %v582 = vpack.c.bf16 %v524, %v514
        %v583 = vpack.c.bf16 %v541, %v532
        %v584 = vpack.c.bf16 %v542, %v529
        %v585 = vpack.c.bf16 %v560, %v551
        %v586 = vpack.c.bf16 %v557, %v552
        %v587 = vpack.c.bf16 %v579, %v569
        %v588 = vpack.c.bf16 %v580, %v570
        %v589 = vpack.c.bf16 %v501, %v501
        %v590 = vpack.c.bf16 %v502, %v502
        %v592 = vsel %vm197, %v589, 0
        %v595 = vsel %vm197, %v590, 0
        %597 = vmatprep.subr.bf16.mxu0 %v582
        %598 = vmatpush1.bf16.msra.mxu0 %v581
        %599 = vmatprep.subr.bf16.mxu0 %v584
        %600 = vmatpush1.bf16.msra.mxu0 %v583
        %601 = vmatprep.subr.bf16.mxu0 %v586
        %602 = vmatpush1.bf16.msra.mxu0 %v585
        %603 = vmatprep.subr.bf16.mxu0 %v588
        %604 = vmatpush1.bf16.msra.mxu0 %v587
        %605 = vmatprep.subr.bf16.mxu0 %v595
        %606 = vmatpush1.bf16.msra.mxu0 %v592
        %607 = vmatprep.subr.bf16.mxu0 0
        %608 = vmatpush1.bf16.msra.mxu0 0
        %609 = vmatprep.subr.bf16.mxu0 0
        %610 = vmatpush1.bf16.msra.mxu0 0
        %611 = vmatprep.subr.bf16.mxu0 0
        %612 = vmatpush1.bf16.msra.mxu0 0
        %613 = vmatprep.subr.bf16.mxu0 0
        %614 = vmatpush1.bf16.msra.mxu0 0
        %615 = vmatprep.subr.bf16.mxu0 0
        %616 = vmatpush1.bf16.msra.mxu0 0
        %617 = vmatprep.subr.bf16.mxu0 0
        %618 = vmatpush1.bf16.msra.mxu0 0
        %619 = vmatprep.subr.bf16.mxu0 0
        %620 = vmatpush1.bf16.msra.mxu0 0
        %621 = vmatprep.subr.bf16.mxu0 0
        %622 = vmatpush1.bf16.msra.mxu0 0
        %623 = vmatprep.subr.bf16.mxu0 0
        %624 = vmatpush1.bf16.msra.mxu0 0
        %625 = vmatprep.subr.bf16.mxu0 0
        %626 = vmatpush1.bf16.msra.mxu0 0
        %627 = vmatprep.subr.bf16.mxu0 0
        %628 = vmatpush1.bf16.msra.mxu0 0
        %629 = vmatprep.mubr.bf16.mxu0 0
        %630 = vmatmul.mubr.bf16.gmra.mrb[0].mxu0 %v298
        %v631 = vpop.f32.mrb[0].mxu0
        %v632 = vadd.f32 0.0, %v631
        %v633 = vpop.f32.mrb[0].mxu0
        %v634 = vadd.f32 0.0, %v633
        %v635 = vpop.f32.mrb[0].mxu0
        %v636 = vpop.f32.mrb[0].mxu0
        %637 = vdwg.mxu0
        %v638 = vmax.f32 %v632, 0.0
        %v639 = vmax.f32 %v634, 0.0
        %642 = vrot.lane.b32.xlu0 %v638, 34
        %v643 = vpop.permute.xlu0 %642
        %644 = vrot.lane.b32.xlu0 %v639, 34
        %v645 = vpop.permute.xlu0 %644
        %v646 = vsel %vm206, %v643, %v645
        %v649 = vsel %vm206, 0.0, %v643
        %v650 = vsel %vm188, %v649, 0.0
        %v651 = vsel %vm189, %v646, 0.0
        %652 = vrot.lane.b32.xlu0 %v638, 33
        %v653 = vpop.permute.xlu0 %652
        %654 = vrot.lane.b32.xlu0 %v639, 33
        %v655 = vpop.permute.xlu0 %654
        %v656 = vsel %vm217, %v653, %v655
        %v659 = vsel %vm217, 0.0, %v653
        %v660 = vsel %vm186, %v659, 0.0
        %v661 = vsel %vm187, %v656, 0.0
        %662 = vrot.lane.b32.xlu0 %v638, 32
        %v663 = vpop.permute.xlu0 %662
        %664 = vrot.lane.b32.xlu0 %v639, 32
        %v665 = vpop.permute.xlu0 %664
        %v666 = vsel %vm228, %v663, %v665
        %v669 = vsel %vm228, 0.0, %v663
        %670 = vrot.lane.b32.xlu0 %v638, 18
        %v671 = vpop.permute.xlu0 %670
        %672 = vrot.lane.b32.xlu0 %v639, 18
        %v673 = vpop.permute.xlu0 %672
        %v674 = vsel %vm237, %v671, %v673
        %v677 = vsel %vm237, 0.0, %v671
        %v678 = vsel %vm188, %v677, 0.0
        %v679 = vsel %vm189, %v674, 0.0
        %680 = vrot.lane.b32.xlu0 %v638, 17
        %v681 = vpop.permute.xlu0 %680
        %682 = vrot.lane.b32.xlu0 %v639, 17
        %v683 = vpop.permute.xlu0 %682
        %v684 = vsel %vm248, %v681, %v683
        %v687 = vsel %vm248, 0.0, %v681
        %v688 = vsel %vm186, %v687, 0.0
        %v689 = vsel %vm187, %v684, 0.0
        %690 = vrot.lane.b32.xlu0 %v638, 16
        %v691 = vpop.permute.xlu0 %690
        %692 = vrot.lane.b32.xlu0 %v639, 16
        %v693 = vpop.permute.xlu0 %692
        %v694 = vsel %vm259, %v691, %v693
        %v697 = vsel %vm259, 0.0, %v691
        %698 = vrot.lane.b32.xlu0 %v638, 2
        %v699 = vpop.permute.xlu0 %698
        %700 = vrot.lane.b32.xlu0 %v639, 2
        %v701 = vpop.permute.xlu0 %700
        %v702 = vsel %vm268, %v699, %v701
        %v705 = vsel %vm268, 0.0, %v699
        %v706 = vsel %vm188, %v705, 0.0
        %v707 = vsel %vm189, %v702, 0.0
        %708 = vrot.lane.b32.xlu0 %v638, 1
        %v709 = vpop.permute.xlu0 %708
        %710 = vrot.lane.b32.xlu0 %v639, 1
        %v711 = vpop.permute.xlu0 %710
        %v712 = vsel %vm279, %v709, %v711
        %v715 = vsel %vm279, 0.0, %v709
        %v716 = vsel %vm186, %v715, 0.0
        %v717 = vsel %vm187, %v712, 0.0
        %v718 = vpack.c.bf16 %v660, %v650
        %v719 = vpack.c.bf16 %v661, %v651
        %v720 = vpack.c.bf16 %v678, %v669
        %v721 = vpack.c.bf16 %v679, %v666
        %v722 = vpack.c.bf16 %v697, %v688
        %v723 = vpack.c.bf16 %v694, %v689
        %v724 = vpack.c.bf16 %v716, %v706
        %v725 = vpack.c.bf16 %v717, %v707
        %v726 = vpack.c.bf16 %v638, %v638
        %v727 = vpack.c.bf16 %v639, %v639
        %v729 = vsel %vm197, %v726, 0
        %v732 = vsel %vm197, %v727, 0
        %734 = vmatprep.subr.bf16.mxu0 %v719
        %735 = vmatpush1.bf16.msra.mxu0 %v718
        %736 = vmatprep.subr.bf16.mxu0 %v721
        %737 = vmatpush1.bf16.msra.mxu0 %v720
        %738 = vmatprep.subr.bf16.mxu0 %v723
        %739 = vmatpush1.bf16.msra.mxu0 %v722
        %740 = vmatprep.subr.bf16.mxu0 %v725
        %741 = vmatpush1.bf16.msra.mxu0 %v724
        %742 = vmatprep.subr.bf16.mxu0 %v732
        %743 = vmatpush1.bf16.msra.mxu0 %v729
        %744 = vmatprep.subr.bf16.mxu0 0
        %745 = vmatpush1.bf16.msra.mxu0 0
        %746 = vmatprep.subr.bf16.mxu0 0
        %747 = vmatpush1.bf16.msra.mxu0 0
        %748 = vmatprep.subr.bf16.mxu0 0
        %749 = vmatpush1.bf16.msra.mxu0 0
        %750 = vmatprep.subr.bf16.mxu0 0
        %751 = vmatpush1.bf16.msra.mxu0 0
        %752 = vmatprep.subr.bf16.mxu0 0
        %753 = vmatpush1.bf16.msra.mxu0 0
        %754 = vmatprep.subr.bf16.mxu0 0
        %755 = vmatpush1.bf16.msra.mxu0 0
        %756 = vmatprep.subr.bf16.mxu0 0
        %757 = vmatpush1.bf16.msra.mxu0 0
        %758 = vmatprep.subr.bf16.mxu0 0
        %759 = vmatpush1.bf16.msra.mxu0 0
        %760 = vmatprep.subr.bf16.mxu0 0
        %761 = vmatpush1.bf16.msra.mxu0 0
        %762 = vmatprep.subr.bf16.mxu0 0
        %763 = vmatpush1.bf16.msra.mxu0 0
        %764 = vmatprep.subr.bf16.mxu0 0
        %765 = vmatpush1.bf16.msra.mxu0 0
        %766 = vmatprep.mubr.bf16.mxu0 0
        %767 = vmatmul.mubr.bf16.gmra.mrb[0].mxu0 %v438
        %v768 = vpop.f32.mrb[0].mxu0
        %v769 = vadd.f32 0.0, %v768
        %v770 = vpop.f32.mrb[0].mxu0
        %v771 = vadd.f32 0.0, %v770
        %v772 = vpop.f32.mrb[0].mxu0
        %v773 = vpop.f32.mrb[0].mxu0
        %774 = vdwg.mxu0
        %v775 = vadd.f32 %v769, %v497
        %v776 = vadd.f32 %v771, %v499
        %v777 = vmax.f32 %v775, 0.0
        %v778 = vmax.f32 %v776, 0.0
        %v781 = vcombine.low %v777, %v778
        %s783 = scalar_lea.vmem %s177, 8 [#allocation7]
        %784 = vst [vmem:[%s783] sm:$0xff] %v781
        %s785 = sand.u32 %s75, 1
        %s786 = scalar_lea.sflag [#allocation4], %s785
        %s787 = sand.u32 %s75, 1
        %s788 = smul.addr %s787, 16
        %s789 = scalar_lea.vmem [#allocation7], %s788
        // Predicated region
        $region37: #{tpu_custom_call.1} parent=27 // pred_check
          %p790 = pneg %p85
        $region38: #{tpu_custom_call.1} parent=27 // pred_check_branch
          %792 = sbr.rel (%p790) target = $region40
        $region39: #{tpu_custom_call.1} parent=27 // pred_region
          %s793 = smul.u32 2, %s20
          %s795 = ssub.s32 256, 256
          %796 = vsyncadd %s786, %s795
          %s797 = smul.addr %s793, 2
          %s798 = smul.addr %s797, 64
          %s799 = scalar_lea.hbm %s2, %s798
          %s800 = sshll.u32 %s789, 4
          %s801 = int_to_ptr.vmem [resolvable:$true] %s800
          %806 = dma.vmem_to_hbm [thread:$0]  %s801, 256, %s799, %s786, 128, 128, 8
        $region40: #{tpu_custom_call.1} parent=27 // pred_fallthru
          _
      $region28: #{tpu_custom_call.1} parent=5 // pred_fallthru
        _
      %p807 = scmp.le.s32.totalorder 2, %s15
      // Predicated region
      $region41: #{tpu_custom_call.1} parent=5 // pred_check
        %p808 = pneg %p807
      $region42: #{tpu_custom_call.1} parent=5 // pred_check_branch
        %810 = sbr.rel (%p808) target = $region44
      $region43: #{tpu_custom_call.1} parent=5 // pred_region
        %s811 = ssub.s32 %s15, 2
        // Predicated region
        $region45: #{tpu_custom_call.1} parent=43 // pred_check
          %p812 = pneg %p91
        $region46: #{tpu_custom_call.1} parent=43 // pred_check_branch
          %814 = sbr.rel (%p812) target = $region48
        $region47: #{tpu_custom_call.1} parent=43 // pred_region
          %s815 = sand.u32 %s76, 1
          %s816 = scalar_lea.sflag [#allocation4], %s815
          %s817 = sand.u32 %s76, 1
          %s818 = smul.addr %s817, 16
          %s819 = scalar_lea.vmem [#allocation7], %s818
          %820 = dma.done %s816, 256
        $region48: #{tpu_custom_call.1} parent=43 // pred_fallthru
          _
      $region44: #{tpu_custom_call.1} parent=5 // pred_fallthru
        _
    $region6: #{tpu_custom_call.1} parent=1 // loop_footer
      %s19 = sadd.s32 1, %s15
    $region7: #{tpu_custom_call.1} parent=1 // loop_footer_branch
      %14 = sbr.rel target = $region3
    $region8: #{tpu_custom_call.1} parent=1 // loop_exit
      _
    %821 = vsyncpa [#allocation3], 1
    %s822 = scalar_lea.sflag [#allocation3], 1
    %823 = vsyncpa %s822, 1
    %824 = vsyncpa [#allocation6], 1
    %825 = vsyncpa [#allocation4], 1
    %s826 = scalar_lea.sflag [#allocation4], 1
    %827 = vsyncpa %s826, 1

</llo_original>
